<compile_context>
chip_gen: v7x
topology: tpu7x:2x2x1
jax: 0.10.0
libtpu: 0.0.40
codegen_flags: <defaults>
</compile_context>

<pallas_src>
import jax
import jax.numpy as jnp
from jax import lax
from jax.experimental import pallas as pl
from jax.experimental.pallas import tpu as pltpu


# ---------------------------------------------------------------------------
# Model hyper-parameters (small, consistent with the ViT-MNIST module)
# ---------------------------------------------------------------------------
BATCH    = 2
SEQ      = 8
DIM      = 32                     # token embedding dim (LayerNorm dim)
HEADS    = 2
DIM_HEAD = 16
INNER    = HEADS * DIM_HEAD       # 32
SCALE    = DIM_HEAD ** (-0.5)     # 0.25
EPS      = 1e-5                   # nn.LayerNorm default
ROWS     = BATCH * SEQ            # 16  (batch folded onto sublanes)


# ---------------------------------------------------------------------------
# Fused PreNorm(LayerNorm) + Attention kernel — single invocation, no scratch
# ---------------------------------------------------------------------------
def prenorm_attention_kernel(x_ref, wqkv_ref, bqkv_ref, wout_ref, bout_ref,
                             o_ref):
    # x_ref    : (ROWS, DIM)      f32   batch*seq rows
    # wqkv_ref : (DIM, 3*INNER)   bf16  pre-transposed, gamma + SCALE folded in
    # bqkv_ref : (1, 3*INNER)     f32   beta @ W_qkv^T (Q slice pre-scaled)
    # wout_ref : (INNER, DIM)     bf16  pre-transposed
    # bout_ref : (1, DIM)         f32
    # o_ref    : (ROWS, DIM)      f32
    x = x_ref[...]                                        # (ROWS, DIM) f32

    # --- LayerNorm statistics only (affine folded into W_qkv / b_qkv) -------
    mean = jnp.mean(x, axis=-1, keepdims=True)
    xc   = x - mean
    var  = jnp.mean(xc * xc, axis=-1, keepdims=True)
    xhat = xc * lax.rsqrt(var + EPS)                      # f32

    # --- QKV projection: ONE bf16 MXU matmul for all batch*seq rows ---------
    qkv = jnp.dot(xhat.astype(jnp.bfloat16), wqkv_ref[...],
                  preferred_element_type=jnp.float32) + bqkv_ref[...]

    # slice q/k/v once; per-head slices below only touch lane offsets 0/16
    qkv16 = qkv.astype(jnp.bfloat16)
    q_all = qkv16[:, 0 * INNER:1 * INNER]                 # (ROWS, INNER)
    k_all = qkv16[:, 1 * INNER:2 * INNER]
    v_all = qkv16[:, 2 * INNER:3 * INNER]

    wout = wout_ref[...]                                  # (INNER, DIM) bf16
    bout = bout_ref[...]                                  # (1, DIM)     f32

    # --- per-(batch, head) attention + fused per-head output projection -----
    for b in range(BATCH):
        r0 = b * SEQ
        acc = jnp.zeros((SEQ, DIM), jnp.float32)          # lives in vregs
        for h in range(HEADS):
            c0 = h * DIM_HEAD
            qh = q_all[r0:r0 + SEQ, c0:c0 + DIM_HEAD]     # bf16 (SEQ, DIM_HEAD)
            kh = k_all[r0:r0 + SEQ, c0:c0 + DIM_HEAD]
            vh = v_all[r0:r0 + SEQ, c0:c0 + DIM_HEAD]

            # contract last dims directly — no explicit kh.T materialized
            dots = lax.dot_general(qh, kh, (((1,), (1,)), ((), ())),
                                   preferred_element_type=jnp.float32)  # (SEQ, SEQ)
            dots = dots - jnp.max(dots, axis=-1, keepdims=True)
            e    = jnp.exp(dots)                                          # f32
            attn = e / jnp.sum(e, axis=-1, keepdims=True)                 # exact

            oh = jnp.dot(attn.astype(jnp.bfloat16), vh,
                         preferred_element_type=jnp.float32)   # (SEQ, DIM_HEAD)

            # fuse this head's slice of the output projection — no scratch,
            # no lane-offset masked stores.
            acc = acc + jnp.dot(oh.astype(jnp.bfloat16),
                                wout[c0:c0 + DIM_HEAD, :],
                                preferred_element_type=jnp.float32)

        # Dropout(p=0.0) == identity — nothing to do.
        o_ref[r0:r0 + SEQ, :] = (acc + bout).astype(o_ref.dtype)


# ---------------------------------------------------------------------------
# Wrapper: host-side weight folding + pallas_call
# ---------------------------------------------------------------------------
def prenorm_attention_forward(x, gamma, beta, w_qkv, w_out, b_out):
    """PreNorm(dim, Attention): y = Attention(LayerNorm(x)).

    x      : (B, N, DIM) float32
    gamma  : (DIM,)  LayerNorm weight     beta : (DIM,) LayerNorm bias
    w_qkv  : (3*INNER, DIM)  torch nn.Linear weight (to_qkv, no bias)
    w_out  : (DIM, INNER)    torch nn.Linear weight (to_out)
    b_out  : (DIM,)          to_out bias
    """
    B, N, D = x.shape
    x2d = x.reshape(B * N, D)                      # fold batch onto sublanes

    # --- one-time host transforms -------------------------------------------
    # pre-transpose to (in, out); fold LN gamma into the weight rows and LN
    # beta into a bias row; fold the attention scale into the Q columns of
    # BOTH the weight and the bias (exact algebra).
    w_qkv_t = w_qkv.T.astype(jnp.float32)          # (DIM, 3*INNER)
    w_fold  = w_qkv_t * gamma[:, None]             # diag(gamma) @ W^T
    b_fold  = beta @ w_qkv_t                       # (3*INNER,)

    wq, wk, wv = jnp.split(w_fold, 3, axis=1)
    bq, bk, bv = jnp.split(b_fold, 3)
    w_qkv_s = jnp.concatenate([wq * SCALE, wk, wv], axis=1)          # (DIM, 96)
    b_qkv_s = jnp.concatenate([bq * SCALE, bk, bv]).reshape(1, 3 * INNER)

    w_qkv_bf = w_qkv_s.astype(jnp.bfloat16)        # bf16 MXU operands
    w_out_bf = w_out.T.astype(jnp.bfloat16)        # (INNER, DIM)
    bout2    = b_out.reshape(1, D).astype(jnp.float32)

    # advisory cost hint (kernel is overhead-bound; helps XLA overlap it)
    cost = pl.CostEstimate(flops=151_000, transcendentals=272,
                           bytes_accessed=12_800)

    vmem_spec = pl.BlockSpec(memory_space=pltpu.MemorySpace.VMEM)

    y2d = pl.pallas_call(
        prenorm_attention_kernel,
        out_shape=jax.ShapeDtypeStruct((B * N, D), x.dtype),
        in_specs=[vmem_spec] * 5,                  # full arrays resident in VMEM
        out_specs=vmem_spec,
        cost_estimate=cost,
    )(x2d, w_qkv_bf, b_qkv_s, w_out_bf, bout2)

    return y2d.reshape(B, N, D)


# ---------------------------------------------------------------------------
# Pure-JAX reference (mirrors the PyTorch forward exactly, f32 throughout)
# ---------------------------------------------------------------------------
def prenorm_attention_reference(x, gamma, beta, w_qkv, w_out, b_out):
    b, n, _ = x.shape
    # LayerNorm (biased variance, eps inside sqrt — PyTorch semantics)
    mean = x.mean(-1, keepdims=True)
    var = ((x - mean) ** 2).mean(-1, keepdims=True)
    xn = (x - mean) / jnp.sqrt(var + EPS) * gamma + beta

    # Attention
    qkv = xn @ w_qkv.T                                   # (b, n, 3*INNER)
    q, k, v = jnp.split(qkv, 3, axis=-1)

    def to_heads(t):  # 'b n (h d) -> b h n d'
        return t.reshape(b, n, HEADS, DIM_HEAD).transpose(0, 2, 1, 3)

    q, k, v = map(to_heads, (q, k, v))
    dots = jnp.einsum('bhid,bhjd->bhij', q, k) * SCALE
    attn = jax.nn.softmax(dots, axis=-1)
    out = jnp.einsum('bhij,bhjd->bhid', attn, v)
    out = out.transpose(0, 2, 1, 3).reshape(b, n, INNER)  # 'b h n d -> b n (h d)'
    return out @ w_out.T + b_out


# ---------------------------------------------------------------------------
if __name__ == "__main__":
    key = jax.random.PRNGKey(0)
    k_x, k_g, k_b, k_qkv, k_out, k_bo = jax.random.split(key, 6)

    # deterministic synthetic parameters; shapes match the PyTorch module
    x     = jax.random.normal(k_x, (BATCH, SEQ, DIM), dtype=jnp.float32)
    gamma = 1.0 + 0.1 * jax.random.normal(k_g, (DIM,), dtype=jnp.float32)
    beta  = 0.1 * jax.random.normal(k_b, (DIM,), dtype=jnp.float32)
    w_qkv = jax.random.normal(k_qkv, (3 * INNER, DIM), dtype=jnp.float32) * 0.05
    w_out = jax.random.normal(k_out, (DIM, INNER), dtype=jnp.float32) * 0.05
    b_out = jax.random.normal(k_bo, (DIM,), dtype=jnp.float32) * 0.05

    y = prenorm_attention_forward(x, gamma, beta, w_qkv, w_out, b_out)
    y = jax.block_until_ready(y)

    y_ref = prenorm_attention_reference(x, gamma, beta, w_qkv, w_out, b_out)
    assert y.shape == (BATCH, SEQ, DIM)
    # tolerance accounts for bf16 MXU operands (f32 accumulation; LN/softmax
    # statistics stay in f32) — observed error is a few 1e-3.
    assert jnp.allclose(y, y_ref, atol=2e-2, rtol=2e-2), "mismatch vs reference"

    print("KERNEL_OK")
</pallas_src>

<mosaic_0001>
module attributes {stable_mosaic.version = 11 : i64} {
  func.func @prenorm_attention_kernel(%arg0: memref<16x32xf32, #tpu.memory_space<vmem>>, %arg1: memref<32x96xbf16, #tpu.memory_space<vmem>>, %arg2: memref<1x96xf32, #tpu.memory_space<vmem>>, %arg3: memref<32x32xbf16, #tpu.memory_space<vmem>>, %arg4: memref<1x32xf32, #tpu.memory_space<vmem>>, %arg5: memref<16x32xf32, #tpu.memory_space<vmem>>) attributes {dimension_semantics = [], scalar_prefetch = 0 : i64, scratch_operands = 0 : i64, tpu.core_type = #tpu.core_type<tc>} {
    %c0 = arith.constant 0 : index
    %c0_0 = arith.constant 0 : index
    %0 = vector.load %arg0[%c0, %c0_0] : memref<16x32xf32, #tpu.memory_space<vmem>>, vector<16x32xf32>
    %cst = arith.constant dense<0.000000e+00> : vector<16xf32>
    %1 = vector.multi_reduction <add>, %0, %cst [1] : vector<16x32xf32> to vector<16xf32>
    %2 = vector.shape_cast %1 : vector<16xf32> to vector<16x1xf32>
    %cst_1 = arith.constant 3.200000e+01 : f32
    %3 = vector.broadcast %cst_1 : f32 to vector<16x1xf32>
    %4 = arith.divf %2, %3 : vector<16x1xf32>
    %5 = vector.broadcast %4 : vector<16x1xf32> to vector<16x32xf32>
    %6 = arith.subf %0, %5 : vector<16x32xf32>
    %7 = arith.mulf %6, %6 : vector<16x32xf32>
    %cst_2 = arith.constant dense<0.000000e+00> : vector<16xf32>
    %8 = vector.multi_reduction <add>, %7, %cst_2 [1] : vector<16x32xf32> to vector<16xf32>
    %9 = vector.shape_cast %8 : vector<16xf32> to vector<16x1xf32>
    %cst_3 = arith.constant 3.200000e+01 : f32
    %10 = vector.broadcast %cst_3 : f32 to vector<16x1xf32>
    %11 = arith.divf %9, %10 : vector<16x1xf32>
    %cst_4 = arith.constant 9.99999974E-6 : f32
    %12 = vector.broadcast %cst_4 : f32 to vector<16x1xf32>
    %13 = arith.addf %11, %12 : vector<16x1xf32>
    %14 = math.rsqrt %13 : vector<16x1xf32>
    %15 = vector.broadcast %14 : vector<16x1xf32> to vector<16x32xf32>
    %16 = arith.mulf %6, %15 : vector<16x32xf32>
    %17 = arith.truncf %16 : vector<16x32xf32> to vector<16x32xbf16>
    %c0_5 = arith.constant 0 : index
    %c0_6 = arith.constant 0 : index
    %18 = vector.load %arg1[%c0_5, %c0_6] : memref<32x96xbf16, #tpu.memory_space<vmem>>, vector<32x96xbf16>
    %cst_7 = arith.constant dense<0.000000e+00> : vector<16x96xf32>
    %19 = tpu.matmul %17, %18, %cst_7 {dimension_numbers = #tpu.dot_dimension_numbers<[1], [0], [0], [1], [0, 0, 1, 1], [], []>} : vector<16x32xbf16>, vector<32x96xbf16>, vector<16x96xf32> -> vector<16x96xf32>
    %c0_8 = arith.constant 0 : index
    %c0_9 = arith.constant 0 : index
    %20 = vector.load %arg2[%c0_8, %c0_9] : memref<1x96xf32, #tpu.memory_space<vmem>>, vector<1x96xf32>
    %21 = vector.broadcast %20 : vector<1x96xf32> to vector<16x96xf32>
    %22 = arith.addf %19, %21 : vector<16x96xf32>
    %23 = arith.truncf %22 : vector<16x96xf32> to vector<16x96xbf16>
    %24 = vector.extract_strided_slice %23 {offsets = [0, 0], sizes = [16, 32], strides = [1, 1]} : vector<16x96xbf16> to vector<16x32xbf16>
    %25 = vector.extract_strided_slice %23 {offsets = [0, 32], sizes = [16, 32], strides = [1, 1]} : vector<16x96xbf16> to vector<16x32xbf16>
    %26 = vector.extract_strided_slice %23 {offsets = [0, 64], sizes = [16, 32], strides = [1, 1]} : vector<16x96xbf16> to vector<16x32xbf16>
    %c0_10 = arith.constant 0 : index
    %c0_11 = arith.constant 0 : index
    %27 = vector.load %arg3[%c0_10, %c0_11] : memref<32x32xbf16, #tpu.memory_space<vmem>>, vector<32x32xbf16>
    %c0_12 = arith.constant 0 : index
    %c0_13 = arith.constant 0 : index
    %28 = vector.load %arg4[%c0_12, %c0_13] : memref<1x32xf32, #tpu.memory_space<vmem>>, vector<1x32xf32>
    %cst_14 = arith.constant 0.000000e+00 : f32
    %29 = vector.broadcast %cst_14 : f32 to vector<8x32xf32>
    %30 = vector.extract_strided_slice %24 {offsets = [0, 0], sizes = [8, 16], strides = [1, 1]} : vector<16x32xbf16> to vector<8x16xbf16>
    %31 = vector.extract_strided_slice %25 {offsets = [0, 0], sizes = [8, 16], strides = [1, 1]} : vector<16x32xbf16> to vector<8x16xbf16>
    %32 = vector.extract_strided_slice %26 {offsets = [0, 0], sizes = [8, 16], strides = [1, 1]} : vector<16x32xbf16> to vector<8x16xbf16>
    %cst_15 = arith.constant dense<0.000000e+00> : vector<8x8xf32>
    %33 = tpu.matmul %30, %31, %cst_15 {dimension_numbers = #tpu.dot_dimension_numbers<[1], [1], [0], [0], [0, 0, 1, 0], [], []>} : vector<8x16xbf16>, vector<8x16xbf16>, vector<8x8xf32> -> vector<8x8xf32>
    %cst_16 = arith.constant dense<0xFF800000> : vector<8xf32>
    %34 = vector.multi_reduction <maximumf>, %33, %cst_16 [1] : vector<8x8xf32> to vector<8xf32>
    %35 = vector.shape_cast %34 : vector<8xf32> to vector<8x1xf32>
    %36 = vector.broadcast %35 : vector<8x1xf32> to vector<8x8xf32>
    %37 = arith.subf %33, %36 : vector<8x8xf32>
    %38 = math.exp %37 : vector<8x8xf32>
    %cst_17 = arith.constant dense<0.000000e+00> : vector<8xf32>
    %39 = vector.multi_reduction <add>, %38, %cst_17 [1] : vector<8x8xf32> to vector<8xf32>
    %40 = vector.shape_cast %39 : vector<8xf32> to vector<8x1xf32>
    %41 = vector.broadcast %40 : vector<8x1xf32> to vector<8x8xf32>
    %42 = arith.divf %38, %41 : vector<8x8xf32>
    %43 = arith.truncf %42 : vector<8x8xf32> to vector<8x8xbf16>
    %cst_18 = arith.constant dense<0.000000e+00> : vector<8x16xf32>
    %44 = tpu.matmul %43, %32, %cst_18 {dimension_numbers = #tpu.dot_dimension_numbers<[1], [0], [0], [1], [0, 0, 1, 1], [], []>} : vector<8x8xbf16>, vector<8x16xbf16>, vector<8x16xf32> -> vector<8x16xf32>
    %45 = arith.truncf %44 : vector<8x16xf32> to vector<8x16xbf16>
    %46 = vector.extract_strided_slice %27 {offsets = [0, 0], sizes = [16, 32], strides = [1, 1]} : vector<32x32xbf16> to vector<16x32xbf16>
    %cst_19 = arith.constant dense<0.000000e+00> : vector<8x32xf32>
    %47 = tpu.matmul %45, %46, %cst_19 {dimension_numbers = #tpu.dot_dimension_numbers<[1], [0], [0], [1], [0, 0, 1, 1], [], []>} : vector<8x16xbf16>, vector<16x32xbf16>, vector<8x32xf32> -> vector<8x32xf32>
    %48 = arith.addf %29, %47 : vector<8x32xf32>
    %49 = vector.extract_strided_slice %24 {offsets = [0, 16], sizes = [8, 16], strides = [1, 1]} : vector<16x32xbf16> to vector<8x16xbf16>
    %50 = vector.extract_strided_slice %25 {offsets = [0, 16], sizes = [8, 16], strides = [1, 1]} : vector<16x32xbf16> to vector<8x16xbf16>
    %51 = vector.extract_strided_slice %26 {offsets = [0, 16], sizes = [8, 16], strides = [1, 1]} : vector<16x32xbf16> to vector<8x16xbf16>
    %cst_20 = arith.constant dense<0.000000e+00> : vector<8x8xf32>
    %52 = tpu.matmul %49, %50, %cst_20 {dimension_numbers = #tpu.dot_dimension_numbers<[1], [1], [0], [0], [0, 0, 1, 0], [], []>} : vector<8x16xbf16>, vector<8x16xbf16>, vector<8x8xf32> -> vector<8x8xf32>
    %cst_21 = arith.constant dense<0xFF800000> : vector<8xf32>
    %53 = vector.multi_reduction <maximumf>, %52, %cst_21 [1] : vector<8x8xf32> to vector<8xf32>
    %54 = vector.shape_cast %53 : vector<8xf32> to vector<8x1xf32>
    %55 = vector.broadcast %54 : vector<8x1xf32> to vector<8x8xf32>
    %56 = arith.subf %52, %55 : vector<8x8xf32>
    %57 = math.exp %56 : vector<8x8xf32>
    %cst_22 = arith.constant dense<0.000000e+00> : vector<8xf32>
    %58 = vector.multi_reduction <add>, %57, %cst_22 [1] : vector<8x8xf32> to vector<8xf32>
    %59 = vector.shape_cast %58 : vector<8xf32> to vector<8x1xf32>
    %60 = vector.broadcast %59 : vector<8x1xf32> to vector<8x8xf32>
    %61 = arith.divf %57, %60 : vector<8x8xf32>
    %62 = arith.truncf %61 : vector<8x8xf32> to vector<8x8xbf16>
    %cst_23 = arith.constant dense<0.000000e+00> : vector<8x16xf32>
    %63 = tpu.matmul %62, %51, %cst_23 {dimension_numbers = #tpu.dot_dimension_numbers<[1], [0], [0], [1], [0, 0, 1, 1], [], []>} : vector<8x8xbf16>, vector<8x16xbf16>, vector<8x16xf32> -> vector<8x16xf32>
    %64 = arith.truncf %63 : vector<8x16xf32> to vector<8x16xbf16>
    %65 = vector.extract_strided_slice %27 {offsets = [16, 0], sizes = [16, 32], strides = [1, 1]} : vector<32x32xbf16> to vector<16x32xbf16>
    %cst_24 = arith.constant dense<0.000000e+00> : vector<8x32xf32>
    %66 = tpu.matmul %64, %65, %cst_24 {dimension_numbers = #tpu.dot_dimension_numbers<[1], [0], [0], [1], [0, 0, 1, 1], [], []>} : vector<8x16xbf16>, vector<16x32xbf16>, vector<8x32xf32> -> vector<8x32xf32>
    %67 = arith.addf %48, %66 : vector<8x32xf32>
    %68 = vector.broadcast %28 : vector<1x32xf32> to vector<8x32xf32>
    %69 = arith.addf %67, %68 : vector<8x32xf32>
    %c0_25 = arith.constant 0 : index
    %c0_26 = arith.constant 0 : index
    %70 = vector.load %arg5[%c0_25, %c0_26] : memref<16x32xf32, #tpu.memory_space<vmem>>, vector<8x32xf32>
    tpu.vector_store %arg5[%c0_25, %c0_26], %69 {strides = array<i32>} : memref<16x32xf32, #tpu.memory_space<vmem>>, vector<8x32xf32>,
    %cst_27 = arith.constant 0.000000e+00 : f32
    %71 = vector.broadcast %cst_27 : f32 to vector<8x32xf32>
    %72 = vector.extract_strided_slice %24 {offsets = [8, 0], sizes = [8, 16], strides = [1, 1]} : vector<16x32xbf16> to vector<8x16xbf16>
    %73 = vector.extract_strided_slice %25 {offsets = [8, 0], sizes = [8, 16], strides = [1, 1]} : vector<16x32xbf16> to vector<8x16xbf16>
    %74 = vector.extract_strided_slice %26 {offsets = [8, 0], sizes = [8, 16], strides = [1, 1]} : vector<16x32xbf16> to vector<8x16xbf16>
    %cst_28 = arith.constant dense<0.000000e+00> : vector<8x8xf32>
    %75 = tpu.matmul %72, %73, %cst_28 {dimension_numbers = #tpu.dot_dimension_numbers<[1], [1], [0], [0], [0, 0, 1, 0], [], []>} : vector<8x16xbf16>, vector<8x16xbf16>, vector<8x8xf32> -> vector<8x8xf32>
    %cst_29 = arith.constant dense<0xFF800000> : vector<8xf32>
    %76 = vector.multi_reduction <maximumf>, %75, %cst_29 [1] : vector<8x8xf32> to vector<8xf32>
    %77 = vector.shape_cast %76 : vector<8xf32> to vector<8x1xf32>
    %78 = vector.broadcast %77 : vector<8x1xf32> to vector<8x8xf32>
    %79 = arith.subf %75, %78 : vector<8x8xf32>
    %80 = math.exp %79 : vector<8x8xf32>
    %cst_30 = arith.constant dense<0.000000e+00> : vector<8xf32>
    %81 = vector.multi_reduction <add>, %80, %cst_30 [1] : vector<8x8xf32> to vector<8xf32>
    %82 = vector.shape_cast %81 : vector<8xf32> to vector<8x1xf32>
    %83 = vector.broadcast %82 : vector<8x1xf32> to vector<8x8xf32>
    %84 = arith.divf %80, %83 : vector<8x8xf32>
    %85 = arith.truncf %84 : vector<8x8xf32> to vector<8x8xbf16>
    %cst_31 = arith.constant dense<0.000000e+00> : vector<8x16xf32>
    %86 = tpu.matmul %85, %74, %cst_31 {dimension_numbers = #tpu.dot_dimension_numbers<[1], [0], [0], [1], [0, 0, 1, 1], [], []>} : vector<8x8xbf16>, vector<8x16xbf16>, vector<8x16xf32> -> vector<8x16xf32>
    %87 = arith.truncf %86 : vector<8x16xf32> to vector<8x16xbf16>
    %88 = vector.extract_strided_slice %27 {offsets = [0, 0], sizes = [16, 32], strides = [1, 1]} : vector<32x32xbf16> to vector<16x32xbf16>
    %cst_32 = arith.constant dense<0.000000e+00> : vector<8x32xf32>
    %89 = tpu.matmul %87, %88, %cst_32 {dimension_numbers = #tpu.dot_dimension_numbers<[1], [0], [0], [1], [0, 0, 1, 1], [], []>} : vector<8x16xbf16>, vector<16x32xbf16>, vector<8x32xf32> -> vector<8x32xf32>
    %90 = arith.addf %71, %89 : vector<8x32xf32>
    %91 = vector.extract_strided_slice %24 {offsets = [8, 16], sizes = [8, 16], strides = [1, 1]} : vector<16x32xbf16> to vector<8x16xbf16>
    %92 = vector.extract_strided_slice %25 {offsets = [8, 16], sizes = [8, 16], strides = [1, 1]} : vector<16x32xbf16> to vector<8x16xbf16>
    %93 = vector.extract_strided_slice %26 {offsets = [8, 16], sizes = [8, 16], strides = [1, 1]} : vector<16x32xbf16> to vector<8x16xbf16>
    %cst_33 = arith.constant dense<0.000000e+00> : vector<8x8xf32>
    %94 = tpu.matmul %91, %92, %cst_33 {dimension_numbers = #tpu.dot_dimension_numbers<[1], [1], [0], [0], [0, 0, 1, 0], [], []>} : vector<8x16xbf16>, vector<8x16xbf16>, vector<8x8xf32> -> vector<8x8xf32>
    %cst_34 = arith.constant dense<0xFF800000> : vector<8xf32>
    %95 = vector.multi_reduction <maximumf>, %94, %cst_34 [1] : vector<8x8xf32> to vector<8xf32>
    %96 = vector.shape_cast %95 : vector<8xf32> to vector<8x1xf32>
    %97 = vector.broadcast %96 : vector<8x1xf32> to vector<8x8xf32>
    %98 = arith.subf %94, %97 : vector<8x8xf32>
    %99 = math.exp %98 : vector<8x8xf32>
    %cst_35 = arith.constant dense<0.000000e+00> : vector<8xf32>
    %100 = vector.multi_reduction <add>, %99, %cst_35 [1] : vector<8x8xf32> to vector<8xf32>
    %101 = vector.shape_cast %100 : vector<8xf32> to vector<8x1xf32>
    %102 = vector.broadcast %101 : vector<8x1xf32> to vector<8x8xf32>
    %103 = arith.divf %99, %102 : vector<8x8xf32>
    %104 = arith.truncf %103 : vector<8x8xf32> to vector<8x8xbf16>
    %cst_36 = arith.constant dense<0.000000e+00> : vector<8x16xf32>
    %105 = tpu.matmul %104, %93, %cst_36 {dimension_numbers = #tpu.dot_dimension_numbers<[1], [0], [0], [1], [0, 0, 1, 1], [], []>} : vector<8x8xbf16>, vector<8x16xbf16>, vector<8x16xf32> -> vector<8x16xf32>
    %106 = arith.truncf %105 : vector<8x16xf32> to vector<8x16xbf16>
    %107 = vector.extract_strided_slice %27 {offsets = [16, 0], sizes = [16, 32], strides = [1, 1]} : vector<32x32xbf16> to vector<16x32xbf16>
    %cst_37 = arith.constant dense<0.000000e+00> : vector<8x32xf32>
    %108 = tpu.matmul %106, %107, %cst_37 {dimension_numbers = #tpu.dot_dimension_numbers<[1], [0], [0], [1], [0, 0, 1, 1], [], []>} : vector<8x16xbf16>, vector<16x32xbf16>, vector<8x32xf32> -> vector<8x32xf32>
    %109 = arith.addf %90, %108 : vector<8x32xf32>
    %110 = vector.broadcast %28 : vector<1x32xf32> to vector<8x32xf32>
    %111 = arith.addf %109, %110 : vector<8x32xf32>
    %c8 = arith.constant 8 : index
    %c0_38 = arith.constant 0 : index
    %112 = vector.load %arg5[%c8, %c0_38] : memref<16x32xf32, #tpu.memory_space<vmem>>, vector<8x32xf32>
    tpu.vector_store %arg5[%c8, %c0_38], %111 {strides = array<i32>} : memref<16x32xf32, #tpu.memory_space<vmem>>, vector<8x32xf32>,
    return
  }
}

</mosaic_0001>

<llo_original>
// kernel: tpu_custom_call.1
$region0: #{tpu_custom_call.1}
  #allocation0 [shape = 'u32[]', space=smem, size = 0x4, offset = 0x4, fixed_abs, tag = 'smem constant byte address 0x4 - core index']
  #allocation1 [shape = 'u32[144,128]{1,0:T(1,128)}', space=vmem, size = 0x12000, scoped, tag = 'internal scratch']
  %s0 = inlined_call_operand.hbm [shape: f32[16,32], index: 0, kind: input, shape index: {}]
  %s1 = inlined_call_operand.hbm [shape: bf16[32,96], index: 1, kind: input, shape index: {}]
  %s2 = inlined_call_operand.vmem [shape: f32[1,96], index: 2, kind: input, shape index: {}]
  %s3 = inlined_call_operand.hbm [shape: bf16[32,32], index: 3, kind: input, shape index: {}]
  %s4 = inlined_call_operand.vmem [shape: f32[1,32], index: 4, kind: input, shape index: {}]
  %s5 = inlined_call_operand.hbm [shape: f32[16,32], index: 5, kind: output, shape index: {}]
  %s6 = sld [smem:[#allocation0]]
  $region42: #{tpu_custom_call.1} parent=0
    _
  %s8 = ssub.s32 1, %s6
  %s9 = scalar_select 0, %s8, %s6
  $region1: #{tpu_custom_call.1} parent=0
    #allocation2 [shape = 'u8[8192]{0}', space=vmem, size = 0x2000, scoped, tag = 'input window, operand 0, single buffered']
    #allocation3 [shape = 's32[1]{0}', space=sflag, size = 0x4, scoped, tag = 'scoped memory for tpu_custom_call.1']
    #allocation4 [shape = 's32[1]{0}', space=sflag, size = 0x4, scoped, tag = 'scoped memory for tpu_custom_call.1']
    #allocation5 [shape = 'u8[8192]{0}', space=vmem, size = 0x2000, scoped, tag = 'input window, operand 1, single buffered']
    #allocation6 [shape = 's32[1]{0}', space=sflag, size = 0x4, scoped, tag = 'scoped memory for tpu_custom_call.1']
    #allocation7 [shape = 'u8[8192]{0}', space=vmem, size = 0x2000, scoped, tag = 'input window, operand 3, single buffered']
    #allocation8 [shape = 'u8[8192]{0}', space=vmem, size = 0x2000, scoped, tag = 'output window, operand 0, single buffered']
    %10 = vsyncpa [#allocation3], 0
    %11 = vsyncpa [#allocation6], 0
    %12 = vsyncpa [#allocation4], 0
    // Predicated region
    $region2: #{tpu_custom_call.1} parent=1 // pred_check
      _
    $region3: #{tpu_custom_call.1} parent=1 // pred_check_branch
      %14 = sbr.rel (0) target = $region5
    $region4: #{tpu_custom_call.1} parent=1 // pred_region
      %s16 = ssub.s32 256, 256
      %17 = vsyncadd [#allocation3], %s16
      %s18 = sshll.u32 [#allocation2], 4
      %s19 = int_to_ptr.vmem [resolvable:$true] %s18
      %24 = dma.hbm_to_vmem [thread:$0]  %s0, 256, %s19, [#allocation3], 128, 128, 8
    $region5: #{tpu_custom_call.1} parent=1 // pred_fallthru
      _
    // Predicated region
    $region6: #{tpu_custom_call.1} parent=1 // pred_check
      _
    $region7: #{tpu_custom_call.1} parent=1 // pred_check_branch
      %26 = sbr.rel (0) target = $region9
    $region8: #{tpu_custom_call.1} parent=1 // pred_region
      %s28 = ssub.s32 256, 256
      %29 = vsyncadd [#allocation6], %s28
      %s30 = sshll.u32 [#allocation5], 4
      %s31 = int_to_ptr.vmem [resolvable:$true] %s30
      %36 = dma.hbm_to_vmem [thread:$0]  %s1, 256, %s31, [#allocation6], 64, 64, 4
    $region9: #{tpu_custom_call.1} parent=1 // pred_fallthru
      _
    // Predicated region
    $region10: #{tpu_custom_call.1} parent=1 // pred_check
      _
    $region11: #{tpu_custom_call.1} parent=1 // pred_check_branch
      %38 = sbr.rel (0) target = $region13
    $region12: #{tpu_custom_call.1} parent=1 // pred_region
      _
    $region13: #{tpu_custom_call.1} parent=1 // pred_fallthru
      _
    // Predicated region
    $region14: #{tpu_custom_call.1} parent=1 // pred_check
      _
    $region15: #{tpu_custom_call.1} parent=1 // pred_check_branch
      %40 = sbr.rel (0) target = $region17
    $region16: #{tpu_custom_call.1} parent=1 // pred_region
      %s42 = ssub.s32 256, 256
      %43 = vsyncadd [#allocation6], %s42
      %s44 = sshll.u32 [#allocation7], 4
      %s45 = int_to_ptr.vmem [resolvable:$true] %s44
      %50 = dma.hbm_to_vmem [thread:$0]  %s3, 256, %s45, [#allocation6], 64, 64, 4
    $region17: #{tpu_custom_call.1} parent=1 // pred_fallthru
      _
    // Predicated region
    $region18: #{tpu_custom_call.1} parent=1 // pred_check
      _
    $region19: #{tpu_custom_call.1} parent=1 // pred_check_branch
      %52 = sbr.rel (0) target = $region21
    $region20: #{tpu_custom_call.1} parent=1 // pred_region
      _
    $region21: #{tpu_custom_call.1} parent=1 // pred_fallthru
      _
    // Predicated region
    $region22: #{tpu_custom_call.1} parent=1 // pred_check
      _
    $region23: #{tpu_custom_call.1} parent=1 // pred_check_branch
      %54 = sbr.rel (0) target = $region25
    $region24: #{tpu_custom_call.1} parent=1 // pred_region
      %55 = dma.done [#allocation3], 256
    $region25: #{tpu_custom_call.1} parent=1 // pred_fallthru
      _
    // Predicated region
    $region26: #{tpu_custom_call.1} parent=1 // pred_check
      _
    $region27: #{tpu_custom_call.1} parent=1 // pred_check_branch
      %57 = sbr.rel (0) target = $region29
    $region28: #{tpu_custom_call.1} parent=1 // pred_region
      %58 = dma.done [#allocation6], 256
    $region29: #{tpu_custom_call.1} parent=1 // pred_fallthru
      _
    // Predicated region
    $region30: #{tpu_custom_call.1} parent=1 // pred_check
      _
    $region31: #{tpu_custom_call.1} parent=1 // pred_check_branch
      %60 = sbr.rel (0) target = $region33
    $region32: #{tpu_custom_call.1} parent=1 // pred_region
      %61 = dma.done [#allocation6], 256
    $region33: #{tpu_custom_call.1} parent=1 // pred_fallthru
      _
    %v63 = vld [vmem:[#allocation2] sm:$0xff]
    %v64 = vld [vmem:[#allocation2 + $0x8] sm:$0xff]
    %vm65 = vcmask 261120
    %v66 = vsel %vm65, %v63, 0.0
    %67 = vadd.xlane.f32.xlu0 %v66
    %v68 = vpop.xlane.xlu0 %67
    %v69 = vsel %vm65, %v64, 0.0
    %70 = vadd.xlane.f32.xlu0 %v69
    %v71 = vpop.xlane.xlu0 %70
    %v72 = vrcp.pop 32.0
    %v73 = vmul.f32 %v68, %v72
    %v74 = vmul.f32 %v71, %v72
    %v75 = vsub.f32 %v63, %v73
    %v76 = vsub.f32 %v64, %v74
    %v77 = vmul.f32 %v75, %v75
    %v78 = vmul.f32 %v76, %v76
    %v79 = vsel %vm65, %v77, 0.0
    %80 = vadd.xlane.f32.xlu0 %v79
    %v81 = vpop.xlane.xlu0 %80
    %v82 = vsel %vm65, %v78, 0.0
    %83 = vadd.xlane.f32.xlu0 %v82
    %v84 = vpop.xlane.xlu0 %83
    %v85 = vmul.f32 %v81, %v72
    %v86 = vmul.f32 %v84, %v72
    %v87 = vadd.f32 %v85, 1e-05
    %v88 = vadd.f32 %v86, 1e-05
    %v89 = vrsqrt.pop %v87
    %v90 = vrsqrt.pop %v88
    %v91 = vmul.f32 %v75, %v89
    %v92 = vmul.f32 %v76, %v90
    %v93 = vpack.c.bf16 %v92, %v91
    %v94 = vld [vmem:[#allocation5] sm:$0xf]
    %v95 = vld [vmem:[#allocation5 + $0x4] sm:$0xf]
    %v96 = vld [vmem:[#allocation5 + $0x8] sm:$0xf]
    %v97 = vld [vmem:[#allocation5 + $0xc] sm:$0xf]
    %v98 = vld [vmem:[%s2] sm:$0x1]
    %v100 = vlaneseq
    %v101 = vshrl.u32 %v100, 7
    %v102 = vsub.s32 0, %v101
    %v103 = vrot.slane %v98, %v102
    %v109 = vunpack.c.l.b16 %v94
    %v110 = vunpack.c.l.b16 %v95
    %v111 = vunpack.c.l.b16 %v96
    %v112 = vunpack.c.l.b16 %v97
    %v113 = vpack.c.b16 %v110, %v109
    %v114 = vpack.c.b16 %v112, %v111
    %v118 = vsel %vm65, %v93, 0
    %120 = vmatprep.subr.bf16.mxu0 0
    %121 = vmatpush1.bf16.msra.mxu0 %v113
    %122 = vmatprep.subr.bf16.mxu0 0
    %123 = vmatpush1.bf16.msra.mxu0 %v114
    %124 = vmatprep.subr.bf16.mxu0 0
    %125 = vmatpush1.bf16.msra.mxu0 0
    %126 = vmatprep.subr.bf16.mxu0 0
    %127 = vmatpush1.bf16.msra.mxu0 0
    %128 = vmatprep.subr.bf16.mxu0 0
    %129 = vmatpush1.bf16.msra.mxu0 0
    %130 = vmatprep.subr.bf16.mxu0 0
    %131 = vmatpush1.bf16.msra.mxu0 0
    %132 = vmatprep.subr.bf16.mxu0 0
    %133 = vmatpush1.bf16.msra.mxu0 0
    %134 = vmatprep.subr.bf16.mxu0 0
    %135 = vmatpush1.bf16.msra.mxu0 0
    %136 = vmatprep.subr.bf16.mxu0 0
    %137 = vmatpush1.bf16.msra.mxu0 0
    %138 = vmatprep.subr.bf16.mxu0 0
    %139 = vmatpush1.bf16.msra.mxu0 0
    %140 = vmatprep.subr.bf16.mxu0 0
    %141 = vmatpush1.bf16.msra.mxu0 0
    %142 = vmatprep.subr.bf16.mxu0 0
    %143 = vmatpush1.bf16.msra.mxu0 0
    %144 = vmatprep.subr.bf16.mxu0 0
    %145 = vmatpush1.bf16.msra.mxu0 0
    %146 = vmatprep.subr.bf16.mxu0 0
    %147 = vmatpush1.bf16.msra.mxu0 0
    %148 = vmatprep.subr.bf16.mxu0 0
    %149 = vmatpush1.bf16.msra.mxu0 0
    %150 = vmatprep.subr.bf16.mxu0 0
    %151 = vmatpush1.bf16.msra.mxu0 0
    %152 = vmatprep.mubr.bf16.mxu0 0
    %153 = vmatmul.mubr.bf16.gmra.mrb[0].mxu0 %v118
    %v154 = vpop.f32.mrb[0].mxu0
    %v155 = vadd.f32 %v103, %v154
    %v156 = vpop.f32.mrb[0].mxu0
    %v157 = vpop.f32.mrb[0].mxu0
    %v158 = vadd.f32 %v103, %v157
    %v159 = vpop.f32.mrb[0].mxu0
    %160 = vdwg.mxu0
    %v161 = vpack.c.bf16 %v158, %v155
    %v162 = vld [vmem:[#allocation7] sm:$0xf]
    %v163 = vld [vmem:[#allocation7 + $0x4] sm:$0xf]
    %v164 = vld [vmem:[#allocation7 + $0x8] sm:$0xf]
    %v165 = vld [vmem:[#allocation7 + $0xc] sm:$0xf]
    %v166 = vld [vmem:[%s4] sm:$0x1]
    %168 = vrot.lane.b32.xlu0 %v161, 96
    %v169 = vpop.permute.xlu0 %168
    %vm170 = vcmask 130048
    %v172 = vsel %vm170, %v161, 0
    %v175 = vsel %vm170, %v169, 0
    %177 = vmatprep.subr.bf16.mxu0 0
    %178 = vmatpush1.bf16.xpose.msra.mxu0 %v175
    %179 = vmatprep.subr.bf16.mxu0 0
    %180 = vmatpush1.bf16.xpose.msra.mxu0 0
    %181 = vmatprep.subr.bf16.mxu0 0
    %182 = vmatpush1.bf16.xpose.msra.mxu0 0
    %183 = vmatprep.subr.bf16.mxu0 0
    %184 = vmatpush1.bf16.xpose.msra.mxu0 0
    %185 = vmatprep.subr.bf16.mxu0 0
    %186 = vmatpush1.bf16.xpose.msra.mxu0 0
    %187 = vmatprep.subr.bf16.mxu0 0
    %188 = vmatpush1.bf16.xpose.msra.mxu0 0
    %189 = vmatprep.subr.bf16.mxu0 0
    %190 = vmatpush1.bf16.xpose.msra.mxu0 0
    %191 = vmatprep.subr.bf16.mxu0 0
    %192 = vmatpush1.bf16.xpose.msra.mxu0 0
    %193 = vmatprep.subr.bf16.mxu0 0
    %194 = vmatpush1.bf16.xpose.msra.mxu0 0
    %195 = vmatprep.subr.bf16.mxu0 0
    %196 = vmatpush1.bf16.xpose.msra.mxu0 0
    %197 = vmatprep.subr.bf16.mxu0 0
    %198 = vmatpush1.bf16.xpose.msra.mxu0 0
    %199 = vmatprep.subr.bf16.mxu0 0
    %200 = vmatpush1.bf16.xpose.msra.mxu0 0
    %201 = vmatprep.subr.bf16.mxu0 0
    %202 = vmatpush1.bf16.xpose.msra.mxu0 0
    %203 = vmatprep.subr.bf16.mxu0 0
    %204 = vmatpush1.bf16.xpose.msra.mxu0 0
    %205 = vmatprep.subr.bf16.mxu0 0
    %206 = vmatpush1.bf16.xpose.msra.mxu0 0
    %207 = vmatprep.subr.bf16.mxu0 0
    %208 = vmatpush1.bf16.xpose.msra.mxu0 0
    %209 = vmatprep.mubr.bf16.mxu0 0
    %210 = vmatmul.mubr.bf16.gmra.mrb[0].mxu0 %v172
    %v211 = vpop.f32.mrb[0].mxu0
    %v212 = vadd.f32 0.0, %v211
    %v213 = vpop.f32.mrb[0].mxu0
    %v214 = vpop.f32.mrb[0].mxu0
    %v215 = vpop.f32.mrb[0].mxu0
    %216 = vdwg.mxu0
    %vm217 = vcmask 64512
    %v218 = vsel %vm217, %v212, -inf
    %219 = vmax.xlane.f32.xlu0 %v218
    %v220 = vpop.xlane.xlu0 %219
    %v221 = vsub.f32 %v212, %v220
    %v222 = vmul.f32 %v221, 1.442695
    %v223 = vpow.pop %v222
    %v224 = vsel %vm217, %v223, 0.0
    %225 = vadd.xlane.f32.xlu0 %v224
    %v226 = vpop.xlane.xlu0 %225
    %v227 = vrcp.pop %v226
    %v228 = vmul.f32 %v223, %v227
    %v229 = vpack.c.bf16 %v228, %v228
    %230 = vrot.lane.b32.xlu0 %v161, 64
    %v231 = vpop.permute.xlu0 %230
    %v233 = vsel %vm217, %v229, 0
    %vm235 = vcmask 1043456
    %v237 = vsel %vm235, %v231, 0
    %239 = vmatprep.subr.bf16.mxu0 0
    %240 = vmatpush1.bf16.msra.mxu0 %v237
    %241 = vmatprep.subr.bf16.mxu0 0
    %242 = vmatpush1.bf16.msra.mxu0 0
    %243 = vmatprep.subr.bf16.mxu0 0
    %244 = vmatpush1.bf16.msra.mxu0 0
    %245 = vmatprep.subr.bf16.mxu0 0
    %246 = vmatpush1.bf16.msra.mxu0 0
    %247 = vmatprep.subr.bf16.mxu0 0
    %248 = vmatpush1.bf16.msra.mxu0 0
    %249 = vmatprep.subr.bf16.mxu0 0
    %250 = vmatpush1.bf16.msra.mxu0 0
    %251 = vmatprep.subr.bf16.mxu0 0
    %252 = vmatpush1.bf16.msra.mxu0 0
    %253 = vmatprep.subr.bf16.mxu0 0
    %254 = vmatpush1.bf16.msra.mxu0 0
    %255 = vmatprep.subr.bf16.mxu0 0
    %256 = vmatpush1.bf16.msra.mxu0 0
    %257 = vmatprep.subr.bf16.mxu0 0
    %258 = vmatpush1.bf16.msra.mxu0 0
    %259 = vmatprep.subr.bf16.mxu0 0
    %260 = vmatpush1.bf16.msra.mxu0 0
    %261 = vmatprep.subr.bf16.mxu0 0
    %262 = vmatpush1.bf16.msra.mxu0 0
    %263 = vmatprep.subr.bf16.mxu0 0
    %264 = vmatpush1.bf16.msra.mxu0 0
    %265 = vmatprep.subr.bf16.mxu0 0
    %266 = vmatpush1.bf16.msra.mxu0 0
    %267 = vmatprep.subr.bf16.mxu0 0
    %268 = vmatpush1.bf16.msra.mxu0 0
    %269 = vmatprep.subr.bf16.mxu0 0
    %270 = vmatpush1.bf16.msra.mxu0 0
    %271 = vmatprep.mubr.bf16.mxu0 0
    %272 = vmatmul.mubr.bf16.gmra.mrb[0].mxu0 %v233
    %v273 = vpop.f32.mrb[0].mxu0
    %v274 = vadd.f32 0.0, %v273
    %v275 = vpop.f32.mrb[0].mxu0
    %v276 = vpop.f32.mrb[0].mxu0
    %v277 = vpop.f32.mrb[0].mxu0
    %278 = vdwg.mxu0
    %v279 = vpack.c.bf16 %v274, %v274
    %280 = vrot.lane.b32.xlu0 %v161, 112
    %v281 = vpop.permute.xlu0 %280
    %282 = vrot.lane.b32.xlu0 %v161, 80
    %v283 = vpop.permute.xlu0 %282
    %v285 = vsel %vm170, %v281, 0
    %v288 = vsel %vm170, %v283, 0
    %290 = vmatprep.subr.bf16.mxu0 0
    %291 = vmatpush1.bf16.xpose.msra.mxu0 %v288
    %292 = vmatprep.subr.bf16.mxu0 0
    %293 = vmatpush1.bf16.xpose.msra.mxu0 0
    %294 = vmatprep.subr.bf16.mxu0 0
    %295 = vmatpush1.bf16.xpose.msra.mxu0 0
    %296 = vmatprep.subr.bf16.mxu0 0
    %297 = vmatpush1.bf16.xpose.msra.mxu0 0
    %298 = vmatprep.subr.bf16.mxu0 0
    %299 = vmatpush1.bf16.xpose.msra.mxu0 0
    %300 = vmatprep.subr.bf16.mxu0 0
    %301 = vmatpush1.bf16.xpose.msra.mxu0 0
    %302 = vmatprep.subr.bf16.mxu0 0
    %303 = vmatpush1.bf16.xpose.msra.mxu0 0
    %304 = vmatprep.subr.bf16.mxu0 0
    %305 = vmatpush1.bf16.xpose.msra.mxu0 0
    %306 = vmatprep.subr.bf16.mxu0 0
    %307 = vmatpush1.bf16.xpose.msra.mxu0 0
    %308 = vmatprep.subr.bf16.mxu0 0
    %309 = vmatpush1.bf16.xpose.msra.mxu0 0
    %310 = vmatprep.subr.bf16.mxu0 0
    %311 = vmatpush1.bf16.xpose.msra.mxu0 0
    %312 = vmatprep.subr.bf16.mxu0 0
    %313 = vmatpush1.bf16.xpose.msra.mxu0 0
    %314 = vmatprep.subr.bf16.mxu0 0
    %315 = vmatpush1.bf16.xpose.msra.mxu0 0
    %316 = vmatprep.subr.bf16.mxu0 0
    %317 = vmatpush1.bf16.xpose.msra.mxu0 0
    %318 = vmatprep.subr.bf16.mxu0 0
    %319 = vmatpush1.bf16.xpose.msra.mxu0 0
    %320 = vmatprep.subr.bf16.mxu0 0
    %321 = vmatpush1.bf16.xpose.msra.mxu0 0
    %322 = vmatprep.mubr.bf16.mxu0 0
    %323 = vmatmul.mubr.bf16.gmra.mrb[0].mxu0 %v285
    %v324 = vpop.f32.mrb[0].mxu0
    %v325 = vadd.f32 0.0, %v324
    %v326 = vpop.f32.mrb[0].mxu0
    %v327 = vpop.f32.mrb[0].mxu0
    %v328 = vpop.f32.mrb[0].mxu0
    %329 = vdwg.mxu0
    %v330 = vsel %vm217, %v325, -inf
    %331 = vmax.xlane.f32.xlu0 %v330
    %v332 = vpop.xlane.xlu0 %331
    %v333 = vsub.f32 %v325, %v332
    %v334 = vmul.f32 %v333, 1.442695
    %v335 = vpow.pop %v334
    %v336 = vsel %vm217, %v335, 0.0
    %337 = vadd.xlane.f32.xlu0 %v336
    %v338 = vpop.xlane.xlu0 %337
    %v339 = vrcp.pop %v338
    %v340 = vmul.f32 %v335, %v339
    %v341 = vpack.c.bf16 %v340, %v340
    %342 = vrot.lane.b32.xlu0 %v161, 48
    %v343 = vpop.permute.xlu0 %342
    %v345 = vsel %vm217, %v341, 0
    %v348 = vsel %vm235, %v343, 0
    %350 = vmatprep.subr.bf16.mxu0 0
    %351 = vmatpush1.bf16.msra.mxu0 %v348
    %352 = vmatprep.subr.bf16.mxu0 0
    %353 = vmatpush1.bf16.msra.mxu0 0
    %354 = vmatprep.subr.bf16.mxu0 0
    %355 = vmatpush1.bf16.msra.mxu0 0
    %356 = vmatprep.subr.bf16.mxu0 0
    %357 = vmatpush1.bf16.msra.mxu0 0
    %358 = vmatprep.subr.bf16.mxu0 0
    %359 = vmatpush1.bf16.msra.mxu0 0
    %360 = vmatprep.subr.bf16.mxu0 0
    %361 = vmatpush1.bf16.msra.mxu0 0
    %362 = vmatprep.subr.bf16.mxu0 0
    %363 = vmatpush1.bf16.msra.mxu0 0
    %364 = vmatprep.subr.bf16.mxu0 0
    %365 = vmatpush1.bf16.msra.mxu0 0
    %366 = vmatprep.subr.bf16.mxu0 0
    %367 = vmatpush1.bf16.msra.mxu0 0
    %368 = vmatprep.subr.bf16.mxu0 0
    %369 = vmatpush1.bf16.msra.mxu0 0
    %370 = vmatprep.subr.bf16.mxu0 0
    %371 = vmatpush1.bf16.msra.mxu0 0
    %372 = vmatprep.subr.bf16.mxu0 0
    %373 = vmatpush1.bf16.msra.mxu0 0
    %374 = vmatprep.subr.bf16.mxu0 0
    %375 = vmatpush1.bf16.msra.mxu0 0
    %376 = vmatprep.subr.bf16.mxu0 0
    %377 = vmatpush1.bf16.msra.mxu0 0
    %378 = vmatprep.subr.bf16.mxu0 0
    %379 = vmatpush1.bf16.msra.mxu0 0
    %380 = vmatprep.subr.bf16.mxu0 0
    %381 = vmatpush1.bf16.msra.mxu0 0
    %382 = vmatprep.mubr.bf16.mxu0 0
    %383 = vmatmul.mubr.bf16.gmra.mrb[0].mxu0 %v345
    %v384 = vpop.f32.mrb[0].mxu0
    %v385 = vadd.f32 0.0, %v384
    %v386 = vpop.f32.mrb[0].mxu0
    %v387 = vpop.f32.mrb[0].mxu0
    %v388 = vpop.f32.mrb[0].mxu0
    %389 = vdwg.mxu0
    %v390 = vpack.c.bf16 %v385, %v385
    %v393 = vunpack.c.l.b16 %v164
    %v394 = vunpack.c.l.b16 %v165
    %v395 = vpack.c.b16 %v394, %v393
    %v398 = vsel %vm170, %v390, 0
    %400 = vmatprep.subr.bf16.mxu0 0
    %401 = vmatpush1.bf16.msra.mxu0 %v395
    %402 = vmatprep.subr.bf16.mxu0 0
    %403 = vmatpush1.bf16.msra.mxu0 0
    %404 = vmatprep.subr.bf16.mxu0 0
    %405 = vmatpush1.bf16.msra.mxu0 0
    %406 = vmatprep.subr.bf16.mxu0 0
    %407 = vmatpush1.bf16.msra.mxu0 0
    %408 = vmatprep.subr.bf16.mxu0 0
    %409 = vmatpush1.bf16.msra.mxu0 0
    %410 = vmatprep.subr.bf16.mxu0 0
    %411 = vmatpush1.bf16.msra.mxu0 0
    %412 = vmatprep.subr.bf16.mxu0 0
    %413 = vmatpush1.bf16.msra.mxu0 0
    %414 = vmatprep.subr.bf16.mxu0 0
    %415 = vmatpush1.bf16.msra.mxu0 0
    %416 = vmatprep.subr.bf16.mxu0 0
    %417 = vmatpush1.bf16.msra.mxu0 0
    %418 = vmatprep.subr.bf16.mxu0 0
    %419 = vmatpush1.bf16.msra.mxu0 0
    %420 = vmatprep.subr.bf16.mxu0 0
    %421 = vmatpush1.bf16.msra.mxu0 0
    %422 = vmatprep.subr.bf16.mxu0 0
    %423 = vmatpush1.bf16.msra.mxu0 0
    %424 = vmatprep.subr.bf16.mxu0 0
    %425 = vmatpush1.bf16.msra.mxu0 0
    %426 = vmatprep.subr.bf16.mxu0 0
    %427 = vmatpush1.bf16.msra.mxu0 0
    %428 = vmatprep.subr.bf16.mxu0 0
    %429 = vmatpush1.bf16.msra.mxu0 0
    %430 = vmatprep.subr.bf16.mxu0 0
    %431 = vmatpush1.bf16.msra.mxu0 0
    %432 = vmatprep.mubr.bf16.mxu0 0
    %433 = vmatmul.mubr.bf16.gmra.mrb[0].mxu0 %v398
    %v434 = vpop.f32.mrb[0].mxu0
    %v435 = vadd.f32 0.0, %v434
    %v436 = vpop.f32.mrb[0].mxu0
    %v437 = vpop.f32.mrb[0].mxu0
    %v438 = vpop.f32.mrb[0].mxu0
    %439 = vdwg.mxu0
    %v442 = vunpack.c.l.b16 %v162
    %v443 = vunpack.c.l.b16 %v163
    %v444 = vpack.c.b16 %v443, %v442
    %v447 = vsel %vm170, %v279, 0
    %449 = vmatprep.subr.bf16.mxu0 0
    %450 = vmatpush1.bf16.msra.mxu0 %v444
    %451 = vmatprep.subr.bf16.mxu0 0
    %452 = vmatpush1.bf16.msra.mxu0 0
    %453 = vmatprep.subr.bf16.mxu0 0
    %454 = vmatpush1.bf16.msra.mxu0 0
    %455 = vmatprep.subr.bf16.mxu0 0
    %456 = vmatpush1.bf16.msra.mxu0 0
    %457 = vmatprep.subr.bf16.mxu0 0
    %458 = vmatpush1.bf16.msra.mxu0 0
    %459 = vmatprep.subr.bf16.mxu0 0
    %460 = vmatpush1.bf16.msra.mxu0 0
    %461 = vmatprep.subr.bf16.mxu0 0
    %462 = vmatpush1.bf16.msra.mxu0 0
    %463 = vmatprep.subr.bf16.mxu0 0
    %464 = vmatpush1.bf16.msra.mxu0 0
    %465 = vmatprep.subr.bf16.mxu0 0
    %466 = vmatpush1.bf16.msra.mxu0 0
    %467 = vmatprep.subr.bf16.mxu0 0
    %468 = vmatpush1.bf16.msra.mxu0 0
    %469 = vmatprep.subr.bf16.mxu0 0
    %470 = vmatpush1.bf16.msra.mxu0 0
    %471 = vmatprep.subr.bf16.mxu0 0
    %472 = vmatpush1.bf16.msra.mxu0 0
    %473 = vmatprep.subr.bf16.mxu0 0
    %474 = vmatpush1.bf16.msra.mxu0 0
    %475 = vmatprep.subr.bf16.mxu0 0
    %476 = vmatpush1.bf16.msra.mxu0 0
    %477 = vmatprep.subr.bf16.mxu0 0
    %478 = vmatpush1.bf16.msra.mxu0 0
    %479 = vmatprep.subr.bf16.mxu0 0
    %480 = vmatpush1.bf16.msra.mxu0 0
    %481 = vmatprep.mubr.bf16.mxu0 0
    %482 = vmatmul.mubr.bf16.gmra.mrb[0].mxu0 %v447
    %v483 = vpop.f32.mrb[0].mxu0
    %v484 = vadd.f32 %v435, %v483
    %v485 = vpop.f32.mrb[0].mxu0
    %v486 = vpop.f32.mrb[0].mxu0
    %v487 = vpop.f32.mrb[0].mxu0
    %488 = vdwg.mxu0
    %v490 = vlaneseq
    %v491 = vshrl.u32 %v490, 7
    %v492 = vsub.s32 0, %v491
    %v493 = vrot.slane %v166, %v492
    %v495 = vadd.f32 %v484, %v493
    %496 = vst.msk [vmem:[#allocation8] sm:$0xff] %vm65, %v495
    %v497 = vrot.slane %v161, 4
    %498 = vrot.lane.b32.xlu0 %v497, 96
    %v499 = vpop.permute.xlu0 %498
    %v501 = vsel %vm170, %v497, 0
    %v504 = vsel %vm170, %v499, 0
    %506 = vmatprep.subr.bf16.mxu0 0
    %507 = vmatpush1.bf16.xpose.msra.mxu0 %v504
    %508 = vmatprep.subr.bf16.mxu0 0
    %509 = vmatpush1.bf16.xpose.msra.mxu0 0
    %510 = vmatprep.subr.bf16.mxu0 0
    %511 = vmatpush1.bf16.xpose.msra.mxu0 0
    %512 = vmatprep.subr.bf16.mxu0 0
    %513 = vmatpush1.bf16.xpose.msra.mxu0 0
    %514 = vmatprep.subr.bf16.mxu0 0
    %515 = vmatpush1.bf16.xpose.msra.mxu0 0
    %516 = vmatprep.subr.bf16.mxu0 0
    %517 = vmatpush1.bf16.xpose.msra.mxu0 0
    %518 = vmatprep.subr.bf16.mxu0 0
    %519 = vmatpush1.bf16.xpose.msra.mxu0 0
    %520 = vmatprep.subr.bf16.mxu0 0
    %521 = vmatpush1.bf16.xpose.msra.mxu0 0
    %522 = vmatprep.subr.bf16.mxu0 0
    %523 = vmatpush1.bf16.xpose.msra.mxu0 0
    %524 = vmatprep.subr.bf16.mxu0 0
    %525 = vmatpush1.bf16.xpose.msra.mxu0 0
    %526 = vmatprep.subr.bf16.mxu0 0
    %527 = vmatpush1.bf16.xpose.msra.mxu0 0
    %528 = vmatprep.subr.bf16.mxu0 0
    %529 = vmatpush1.bf16.xpose.msra.mxu0 0
    %530 = vmatprep.subr.bf16.mxu0 0
    %531 = vmatpush1.bf16.xpose.msra.mxu0 0
    %532 = vmatprep.subr.bf16.mxu0 0
    %533 = vmatpush1.bf16.xpose.msra.mxu0 0
    %534 = vmatprep.subr.bf16.mxu0 0
    %535 = vmatpush1.bf16.xpose.msra.mxu0 0
    %536 = vmatprep.subr.bf16.mxu0 0
    %537 = vmatpush1.bf16.xpose.msra.mxu0 0
    %538 = vmatprep.mubr.bf16.mxu0 0
    %539 = vmatmul.mubr.bf16.gmra.mrb[0].mxu0 %v501
    %v540 = vpop.f32.mrb[0].mxu0
    %v541 = vadd.f32 0.0, %v540
    %v542 = vpop.f32.mrb[0].mxu0
    %v543 = vpop.f32.mrb[0].mxu0
    %v544 = vpop.f32.mrb[0].mxu0
    %545 = vdwg.mxu0
    %v546 = vsel %vm217, %v541, -inf
    %547 = vmax.xlane.f32.xlu0 %v546
    %v548 = vpop.xlane.xlu0 %547
    %v549 = vsub.f32 %v541, %v548
    %v550 = vmul.f32 %v549, 1.442695
    %v551 = vpow.pop %v550
    %v552 = vsel %vm217, %v551, 0.0
    %553 = vadd.xlane.f32.xlu0 %v552
    %v554 = vpop.xlane.xlu0 %553
    %v555 = vrcp.pop %v554
    %v556 = vmul.f32 %v551, %v555
    %v557 = vpack.c.bf16 %v556, %v556
    %558 = vrot.lane.b32.xlu0 %v497, 64
    %v559 = vpop.permute.xlu0 %558
    %v561 = vsel %vm217, %v557, 0
    %v564 = vsel %vm235, %v559, 0
    %566 = vmatprep.subr.bf16.mxu0 0
    %567 = vmatpush1.bf16.msra.mxu0 %v564
    %568 = vmatprep.subr.bf16.mxu0 0
    %569 = vmatpush1.bf16.msra.mxu0 0
    %570 = vmatprep.subr.bf16.mxu0 0
    %571 = vmatpush1.bf16.msra.mxu0 0
    %572 = vmatprep.subr.bf16.mxu0 0
    %573 = vmatpush1.bf16.msra.mxu0 0
    %574 = vmatprep.subr.bf16.mxu0 0
    %575 = vmatpush1.bf16.msra.mxu0 0
    %576 = vmatprep.subr.bf16.mxu0 0
    %577 = vmatpush1.bf16.msra.mxu0 0
    %578 = vmatprep.subr.bf16.mxu0 0
    %579 = vmatpush1.bf16.msra.mxu0 0
    %580 = vmatprep.subr.bf16.mxu0 0
    %581 = vmatpush1.bf16.msra.mxu0 0
    %582 = vmatprep.subr.bf16.mxu0 0
    %583 = vmatpush1.bf16.msra.mxu0 0
    %584 = vmatprep.subr.bf16.mxu0 0
    %585 = vmatpush1.bf16.msra.mxu0 0
    %586 = vmatprep.subr.bf16.mxu0 0
    %587 = vmatpush1.bf16.msra.mxu0 0
    %588 = vmatprep.subr.bf16.mxu0 0
    %589 = vmatpush1.bf16.msra.mxu0 0
    %590 = vmatprep.subr.bf16.mxu0 0
    %591 = vmatpush1.bf16.msra.mxu0 0
    %592 = vmatprep.subr.bf16.mxu0 0
    %593 = vmatpush1.bf16.msra.mxu0 0
    %594 = vmatprep.subr.bf16.mxu0 0
    %595 = vmatpush1.bf16.msra.mxu0 0
    %596 = vmatprep.subr.bf16.mxu0 0
    %597 = vmatpush1.bf16.msra.mxu0 0
    %598 = vmatprep.mubr.bf16.mxu0 0
    %599 = vmatmul.mubr.bf16.gmra.mrb[0].mxu0 %v561
    %v600 = vpop.f32.mrb[0].mxu0
    %v601 = vadd.f32 0.0, %v600
    %v602 = vpop.f32.mrb[0].mxu0
    %v603 = vpop.f32.mrb[0].mxu0
    %v604 = vpop.f32.mrb[0].mxu0
    %605 = vdwg.mxu0
    %v606 = vpack.c.bf16 %v601, %v601
    %607 = vrot.lane.b32.xlu0 %v497, 112
    %v608 = vpop.permute.xlu0 %607
    %609 = vrot.lane.b32.xlu0 %v497, 80
    %v610 = vpop.permute.xlu0 %609
    %v612 = vsel %vm170, %v608, 0
    %v615 = vsel %vm170, %v610, 0
    %617 = vmatprep.subr.bf16.mxu0 0
    %618 = vmatpush1.bf16.xpose.msra.mxu0 %v615
    %619 = vmatprep.subr.bf16.mxu0 0
    %620 = vmatpush1.bf16.xpose.msra.mxu0 0
    %621 = vmatprep.subr.bf16.mxu0 0
    %622 = vmatpush1.bf16.xpose.msra.mxu0 0
    %623 = vmatprep.subr.bf16.mxu0 0
    %624 = vmatpush1.bf16.xpose.msra.mxu0 0
    %625 = vmatprep.subr.bf16.mxu0 0
    %626 = vmatpush1.bf16.xpose.msra.mxu0 0
    %627 = vmatprep.subr.bf16.mxu0 0
    %628 = vmatpush1.bf16.xpose.msra.mxu0 0
    %629 = vmatprep.subr.bf16.mxu0 0
    %630 = vmatpush1.bf16.xpose.msra.mxu0 0
    %631 = vmatprep.subr.bf16.mxu0 0
    %632 = vmatpush1.bf16.xpose.msra.mxu0 0
    %633 = vmatprep.subr.bf16.mxu0 0
    %634 = vmatpush1.bf16.xpose.msra.mxu0 0
    %635 = vmatprep.subr.bf16.mxu0 0
    %636 = vmatpush1.bf16.xpose.msra.mxu0 0
    %637 = vmatprep.subr.bf16.mxu0 0
    %638 = vmatpush1.bf16.xpose.msra.mxu0 0
    %639 = vmatprep.subr.bf16.mxu0 0
    %640 = vmatpush1.bf16.xpose.msra.mxu0 0
    %641 = vmatprep.subr.bf16.mxu0 0
    %642 = vmatpush1.bf16.xpose.msra.mxu0 0
    %643 = vmatprep.subr.bf16.mxu0 0
    %644 = vmatpush1.bf16.xpose.msra.mxu0 0
    %645 = vmatprep.subr.bf16.mxu0 0
    %646 = vmatpush1.bf16.xpose.msra.mxu0 0
    %647 = vmatprep.subr.bf16.mxu0 0
    %648 = vmatpush1.bf16.xpose.msra.mxu0 0
    %649 = vmatprep.mubr.bf16.mxu0 0
    %650 = vmatmul.mubr.bf16.gmra.mrb[0].mxu0 %v612
    %v651 = vpop.f32.mrb[0].mxu0
    %v652 = vadd.f32 0.0, %v651
    %v653 = vpop.f32.mrb[0].mxu0
    %v654 = vpop.f32.mrb[0].mxu0
    %v655 = vpop.f32.mrb[0].mxu0
    %656 = vdwg.mxu0
    %v657 = vsel %vm217, %v652, -inf
    %658 = vmax.xlane.f32.xlu0 %v657
    %v659 = vpop.xlane.xlu0 %658
    %v660 = vsub.f32 %v652, %v659
    %v661 = vmul.f32 %v660, 1.442695
    %v662 = vpow.pop %v661
    %v663 = vsel %vm217, %v662, 0.0
    %664 = vadd.xlane.f32.xlu0 %v663
    %v665 = vpop.xlane.xlu0 %664
    %v666 = vrcp.pop %v665
    %v667 = vmul.f32 %v662, %v666
    %v668 = vpack.c.bf16 %v667, %v667
    %669 = vrot.lane.b32.xlu0 %v497, 48
    %v670 = vpop.permute.xlu0 %669
    %v672 = vsel %vm217, %v668, 0
    %v675 = vsel %vm235, %v670, 0
    %677 = vmatprep.subr.bf16.mxu0 0
    %678 = vmatpush1.bf16.msra.mxu0 %v675
    %679 = vmatprep.subr.bf16.mxu0 0
    %680 = vmatpush1.bf16.msra.mxu0 0
    %681 = vmatprep.subr.bf16.mxu0 0
    %682 = vmatpush1.bf16.msra.mxu0 0
    %683 = vmatprep.subr.bf16.mxu0 0
    %684 = vmatpush1.bf16.msra.mxu0 0
    %685 = vmatprep.subr.bf16.mxu0 0
    %686 = vmatpush1.bf16.msra.mxu0 0
    %687 = vmatprep.subr.bf16.mxu0 0
    %688 = vmatpush1.bf16.msra.mxu0 0
    %689 = vmatprep.subr.bf16.mxu0 0
    %690 = vmatpush1.bf16.msra.mxu0 0
    %691 = vmatprep.subr.bf16.mxu0 0
    %692 = vmatpush1.bf16.msra.mxu0 0
    %693 = vmatprep.subr.bf16.mxu0 0
    %694 = vmatpush1.bf16.msra.mxu0 0
    %695 = vmatprep.subr.bf16.mxu0 0
    %696 = vmatpush1.bf16.msra.mxu0 0
    %697 = vmatprep.subr.bf16.mxu0 0
    %698 = vmatpush1.bf16.msra.mxu0 0
    %699 = vmatprep.subr.bf16.mxu0 0
    %700 = vmatpush1.bf16.msra.mxu0 0
    %701 = vmatprep.subr.bf16.mxu0 0
    %702 = vmatpush1.bf16.msra.mxu0 0
    %703 = vmatprep.subr.bf16.mxu0 0
    %704 = vmatpush1.bf16.msra.mxu0 0
    %705 = vmatprep.subr.bf16.mxu0 0
    %706 = vmatpush1.bf16.msra.mxu0 0
    %707 = vmatprep.subr.bf16.mxu0 0
    %708 = vmatpush1.bf16.msra.mxu0 0
    %709 = vmatprep.mubr.bf16.mxu0 0
    %710 = vmatmul.mubr.bf16.gmra.mrb[0].mxu0 %v672
    %v711 = vpop.f32.mrb[0].mxu0
    %v712 = vadd.f32 0.0, %v711
    %v713 = vpop.f32.mrb[0].mxu0
    %v714 = vpop.f32.mrb[0].mxu0
    %v715 = vpop.f32.mrb[0].mxu0
    %716 = vdwg.mxu0
    %v717 = vpack.c.bf16 %v712, %v712
    %v719 = vsel %vm170, %v717, 0
    %721 = vmatprep.subr.bf16.mxu0 0
    %722 = vmatpush1.bf16.msra.mxu0 %v395
    %723 = vmatprep.subr.bf16.mxu0 0
    %724 = vmatpush1.bf16.msra.mxu0 0
    %725 = vmatprep.subr.bf16.mxu0 0
    %726 = vmatpush1.bf16.msra.mxu0 0
    %727 = vmatprep.subr.bf16.mxu0 0
    %728 = vmatpush1.bf16.msra.mxu0 0
    %729 = vmatprep.subr.bf16.mxu0 0
    %730 = vmatpush1.bf16.msra.mxu0 0
    %731 = vmatprep.subr.bf16.mxu0 0
    %732 = vmatpush1.bf16.msra.mxu0 0
    %733 = vmatprep.subr.bf16.mxu0 0
    %734 = vmatpush1.bf16.msra.mxu0 0
    %735 = vmatprep.subr.bf16.mxu0 0
    %736 = vmatpush1.bf16.msra.mxu0 0
    %737 = vmatprep.subr.bf16.mxu0 0
    %738 = vmatpush1.bf16.msra.mxu0 0
    %739 = vmatprep.subr.bf16.mxu0 0
    %740 = vmatpush1.bf16.msra.mxu0 0
    %741 = vmatprep.subr.bf16.mxu0 0
    %742 = vmatpush1.bf16.msra.mxu0 0
    %743 = vmatprep.subr.bf16.mxu0 0
    %744 = vmatpush1.bf16.msra.mxu0 0
    %745 = vmatprep.subr.bf16.mxu0 0
    %746 = vmatpush1.bf16.msra.mxu0 0
    %747 = vmatprep.subr.bf16.mxu0 0
    %748 = vmatpush1.bf16.msra.mxu0 0
    %749 = vmatprep.subr.bf16.mxu0 0
    %750 = vmatpush1.bf16.msra.mxu0 0
    %751 = vmatprep.subr.bf16.mxu0 0
    %752 = vmatpush1.bf16.msra.mxu0 0
    %753 = vmatprep.mubr.bf16.mxu0 0
    %754 = vmatmul.mubr.bf16.gmra.mrb[0].mxu0 %v719
    %v755 = vpop.f32.mrb[0].mxu0
    %v756 = vadd.f32 0.0, %v755
    %v757 = vpop.f32.mrb[0].mxu0
    %v758 = vpop.f32.mrb[0].mxu0
    %v759 = vpop.f32.mrb[0].mxu0
    %760 = vdwg.mxu0
    %v762 = vsel %vm170, %v606, 0
    %764 = vmatprep.subr.bf16.mxu0 0
    %765 = vmatpush1.bf16.msra.mxu0 %v444
    %766 = vmatprep.subr.bf16.mxu0 0
    %767 = vmatpush1.bf16.msra.mxu0 0
    %768 = vmatprep.subr.bf16.mxu0 0
    %769 = vmatpush1.bf16.msra.mxu0 0
    %770 = vmatprep.subr.bf16.mxu0 0
    %771 = vmatpush1.bf16.msra.mxu0 0
    %772 = vmatprep.subr.bf16.mxu0 0
    %773 = vmatpush1.bf16.msra.mxu0 0
    %774 = vmatprep.subr.bf16.mxu0 0
    %775 = vmatpush1.bf16.msra.mxu0 0
    %776 = vmatprep.subr.bf16.mxu0 0
    %777 = vmatpush1.bf16.msra.mxu0 0
    %778 = vmatprep.subr.bf16.mxu0 0
    %779 = vmatpush1.bf16.msra.mxu0 0
    %780 = vmatprep.subr.bf16.mxu0 0
    %781 = vmatpush1.bf16.msra.mxu0 0
    %782 = vmatprep.subr.bf16.mxu0 0
    %783 = vmatpush1.bf16.msra.mxu0 0
    %784 = vmatprep.subr.bf16.mxu0 0
    %785 = vmatpush1.bf16.msra.mxu0 0
    %786 = vmatprep.subr.bf16.mxu0 0
    %787 = vmatpush1.bf16.msra.mxu0 0
    %788 = vmatprep.subr.bf16.mxu0 0
    %789 = vmatpush1.bf16.msra.mxu0 0
    %790 = vmatprep.subr.bf16.mxu0 0
    %791 = vmatpush1.bf16.msra.mxu0 0
    %792 = vmatprep.subr.bf16.mxu0 0
    %793 = vmatpush1.bf16.msra.mxu0 0
    %794 = vmatprep.subr.bf16.mxu0 0
    %795 = vmatpush1.bf16.msra.mxu0 0
    %796 = vmatprep.mubr.bf16.mxu0 0
    %797 = vmatmul.mubr.bf16.gmra.mrb[0].mxu0 %v762
    %v798 = vpop.f32.mrb[0].mxu0
    %v799 = vadd.f32 %v756, %v798
    %v800 = vpop.f32.mrb[0].mxu0
    %v801 = vpop.f32.mrb[0].mxu0
    %v802 = vpop.f32.mrb[0].mxu0
    %803 = vdwg.mxu0
    %v804 = vadd.f32 %v799, %v493
    %805 = vst.msk [vmem:[#allocation8 + $0x8] sm:$0xff] %vm65, %v804
    // Predicated region
    $region34: #{tpu_custom_call.1} parent=1 // pred_check
      _
    $region35: #{tpu_custom_call.1} parent=1 // pred_check_branch
      %807 = sbr.rel (0) target = $region37
    $region36: #{tpu_custom_call.1} parent=1 // pred_region
      %s809 = ssub.s32 256, 256
      %810 = vsyncadd [#allocation4], %s809
      %s811 = sshll.u32 [#allocation8], 4
      %s812 = int_to_ptr.vmem [resolvable:$true] %s811
      %817 = dma.vmem_to_hbm [thread:$0]  %s812, 256, %s5, [#allocation4], 128, 128, 8
    $region37: #{tpu_custom_call.1} parent=1 // pred_fallthru
      _
    // Predicated region
    $region38: #{tpu_custom_call.1} parent=1 // pred_check
      _
    $region39: #{tpu_custom_call.1} parent=1 // pred_check_branch
      %819 = sbr.rel (0) target = $region41
    $region40: #{tpu_custom_call.1} parent=1 // pred_region
      %820 = dma.done [#allocation4], 256
    $region41: #{tpu_custom_call.1} parent=1 // pred_fallthru
      _
    %821 = vsyncpa [#allocation3], 1
    %822 = vsyncpa [#allocation6], 1
    %823 = vsyncpa [#allocation4], 1

</llo_original>
